<compile_context>
chip_gen: v7x
topology: tpu7x:2x2x1
jax: 0.10.0
libtpu: 0.0.40
codegen_flags: <defaults>
</compile_context>

<pallas_src>
import jax
import jax.numpy as jnp
from jax import lax
from jax.experimental import pallas as pl
from jax.experimental.pallas import tpu as pltpu


# ---------------------------------------------------------------------------
# Streaming broadcast-affine kernels (memory-bound).
# ---------------------------------------------------------------------------
def _affine_stream_kernel(scale_ref, shift_ref, x_ref, o_ref):
    # scale/shift: (1, TC, 1) in x.dtype (channels on sublanes -> cheap lane
    # broadcast); x/o: (1, TC, TL) in x.dtype.
    o_ref[...] = x_ref[...] * scale_ref[...] + shift_ref[...]


def _shift_stream_kernel(shift_ref, x_ref, o_ref):
    o_ref[...] = x_ref[...] + shift_ref[...]


# ---------------------------------------------------------------------------
# Tiling helpers.
# ---------------------------------------------------------------------------
def _round_up(v, q):
    return ((v + q - 1) // q) * q


def _vmem_capacity_bytes():
    """Physical VMEM of the current generation; conservative (v7x) fallback."""
    try:
        info = pltpu.get_tpu_info()
        cap = getattr(info, "vmem_capacity_bytes", None)
        if cap:
            return int(cap)
    except Exception:
        pass
    return 64 * 1024 * 1024


def _choose_tiles(B, C, L, itemsize, block_bytes, max_block_bytes):
    """L-major tile selection with cdiv grids (edge blocks masked by Pallas)."""
    block_bytes = max(128 * 8 * itemsize, min(block_bytes, max_block_bytes))

    # Channel tile: cap so the lane-padded (tc, 1) scale/shift buffers stay
    # small; use the full C when it is small (full-extent blocks are always
    # legal, no divisibility needed).
    TC_CAP = 256
    tc = C if C <= TC_CAP else TC_CAP

    # Length tile first (contiguous axis -> long DMA bursts, unmasked stores):
    # full L when it fits the per-block budget, else the largest 128-multiple
    # that does.  cdiv grid masks the ragged tail.
    tl_budget = max(128, (block_bytes // max(1, tc * itemsize)) // 128 * 128)
    tl = L if L <= tl_budget else tl_budget

    # v7x megacore: guarantee >= 2 grid steps so both TensorCores stream
    # (neutral on single-TC v5e/v6e).
    def n_steps(tc_, tl_):
        return B * pl.cdiv(C, tc_) * pl.cdiv(L, tl_)

    if n_steps(tc, tl) < 2:
        tl_half = _round_up(pl.cdiv(L, 2), 128)
        tc_half = _round_up(pl.cdiv(C, 2), 8)
        if tl_half < L:
            tl = tl_half
        elif tc_half < C:
            tc = tc_half
    return tc, tl


# ---------------------------------------------------------------------------
# Public entry point.
# ---------------------------------------------------------------------------
def feature_wise_affine(x, noise_embed, weight, bias, *,
                        use_affine_level=False,
                        block_bytes=8 * 1024 * 1024):
    """FeatureWiseAffine forward.

    x:           (B, C, L)
    noise_embed: (B, Cin)
    weight:      (F, Cin)  torch nn.Linear layout, F = C * (1 + use_affine_level)
    bias:        (F,)
    """
    B, C, L = x.shape
    F = weight.shape[0]
    assert F == C * (2 if use_affine_level else 1)
    itemsize = jnp.dtype(x.dtype).itemsize

    # ---- Noise projection (tiny Linear) + hoisted relayout, once, in JAX ----
    proj = lax.dot_general(
        noise_embed.astype(jnp.float32), weight.astype(jnp.float32),
        dimension_numbers=(((1,), (1,)), ((), ())),
        preferred_element_type=jnp.float32,
    ) + bias.astype(jnp.float32)                                    # (B, F)

    if use_affine_level:
        scale = (1.0 + proj[:, :C]).astype(x.dtype)[:, :, None]     # (B, C, 1)
        shift = proj[:, C:].astype(x.dtype)[:, :, None]             # (B, C, 1)
    else:
        scale = None
        shift = proj.astype(x.dtype)[:, :, None]                    # (B, C, 1)

    # ---- Generation-aware VMEM budget & tile sizes ----
    vmem_cap = _vmem_capacity_bytes()
    # v7x (64 MiB phys)  -> 48 MiB scoped; v5e/v6e (128 MiB phys) -> 64 MiB.
    vmem_limit = int(min(max(vmem_cap - (16 << 20), 32 << 20), 64 << 20))
    # Double-buffered x in + out ~= 4 * block; reserve ~4 MiB for scale/shift
    # lane padding and slack.
    max_block_bytes = max(128 * 128 * itemsize, (vmem_limit - (4 << 20)) // 4)
    tc, tl = _choose_tiles(B, C, L, itemsize, block_bytes, max_block_bytes)
    grid = (B, pl.cdiv(C, tc), pl.cdiv(L, tl))   # L innermost -> scale/shift
                                                 # blocks reused across it.

    x_spec = pl.BlockSpec((1, tc, tl), lambda b, ci, li: (b, ci, li))
    s_spec = pl.BlockSpec((1, tc, 1), lambda b, ci, li: (b, ci, 0))

    n_vec = 2 if use_affine_level else 1
    cost = pl.CostEstimate(
        flops=(2 if use_affine_level else 1) * B * C * L,
        transcendentals=0,
        bytes_accessed=2 * B * C * L * itemsize + n_vec * B * C * itemsize,
    )
    compiler_params = pltpu.CompilerParams(
        dimension_semantics=("parallel", "parallel", "parallel"),
        vmem_limit_bytes=vmem_limit,
    )

    if use_affine_level:
        kernel = _affine_stream_kernel
        operands = (scale, shift, x)
        in_specs = [s_spec, s_spec, x_spec]
    else:
        kernel = _shift_stream_kernel
        operands = (shift, x)
        in_specs = [s_spec, x_spec]

    return pl.pallas_call(
        kernel,
        out_shape=jax.ShapeDtypeStruct((B, C, L), x.dtype),
        grid_spec=pltpu.PrefetchScalarGridSpec(
            num_scalar_prefetch=0,
            grid=grid,
            in_specs=in_specs,
            out_specs=x_spec,
        ),
        compiler_params=compiler_params,
        cost_estimate=cost,
    )(*operands)


# ---------------------------------------------------------------------------
# Reference + tests
# ---------------------------------------------------------------------------
def _reference(x, noise_embed, weight, bias, *, use_affine_level=False):
    B, C, L = x.shape
    proj = noise_embed @ weight.T + bias            # (B, F)
    if use_affine_level:
        gamma = proj[:, :C][:, :, None]
        beta = proj[:, C:][:, :, None]
        return (1.0 + gamma) * x + beta
    return x + proj[:, :, None]


if __name__ == "__main__":
    key = jax.random.PRNGKey(0)
    B, C, L, Cin = 2, 4, 16, 32   # batch, out_channels, length, in_channels

    k_x, k_ne, k_w1, k_b1, k_w2, k_b2, k_x2, k_x3 = jax.random.split(key, 8)
    x = jax.random.normal(k_x, (B, C, L), dtype=jnp.float32)
    noise_embed = jax.random.normal(k_ne, (B, Cin), dtype=jnp.float32)
    bound = 1.0 / (Cin ** 0.5)

    # --- use_affine_level = False: Linear(Cin -> C) ---
    w1 = jax.random.uniform(k_w1, (C, Cin), minval=-bound, maxval=bound)
    b1 = jax.random.uniform(k_b1, (C,), minval=-bound, maxval=bound)
    out1 = feature_wise_affine(x, noise_embed, w1, b1, use_affine_level=False)
    jax.block_until_ready(out1)
    ref1 = _reference(x, noise_embed, w1, b1, use_affine_level=False)
    assert jnp.allclose(out1, ref1, atol=1e-5, rtol=1e-5)

    # --- use_affine_level = True: Linear(Cin -> 2*C) ---
    w2 = jax.random.uniform(k_w2, (2 * C, Cin), minval=-bound, maxval=bound)
    b2 = jax.random.uniform(k_b2, (2 * C,), minval=-bound, maxval=bound)
    out2 = feature_wise_affine(x, noise_embed, w2, b2, use_affine_level=True)
    jax.block_until_ready(out2)
    ref2 = _reference(x, noise_embed, w2, b2, use_affine_level=True)
    assert jnp.allclose(out2, ref2, atol=1e-5, rtol=1e-5)

    # --- cdiv-masked tiled grid: L not a multiple of the length tile ---
    C2, L2 = 24, 1000
    x_big = jax.random.normal(k_x2, (B, C2, L2), dtype=jnp.float32)
    w3 = jax.random.uniform(k_w1, (2 * C2, Cin), minval=-bound, maxval=bound)
    b3 = jax.random.uniform(k_b1, (2 * C2,), minval=-bound, maxval=bound)
    out3 = feature_wise_affine(x_big, noise_embed, w3, b3,
                               use_affine_level=True, block_bytes=64 * 1024)
    jax.block_until_ready(out3)
    ref3 = _reference(x_big, noise_embed, w3, b3, use_affine_level=True)
    assert jnp.allclose(out3, ref3, atol=1e-5, rtol=1e-5)

    # --- single-batch input: exercises the >=2-grid-step (megacore) split ---
    x_one = jax.random.normal(k_x3, (1, 8, 512), dtype=jnp.float32)
    ne_one = noise_embed[:1]
    w4 = jax.random.uniform(k_w2, (8, Cin), minval=-bound, maxval=bound)
    b4 = jax.random.uniform(k_b2, (8,), minval=-bound, maxval=bound)
    out4 = feature_wise_affine(x_one, ne_one, w4, b4, use_affine_level=False)
    jax.block_until_ready(out4)
    ref4 = _reference(x_one, ne_one, w4, b4, use_affine_level=False)
    assert jnp.allclose(out4, ref4, atol=1e-5, rtol=1e-5)

    print("KERNEL_OK")
</pallas_src>

<mosaic_0001>
module attributes {stable_mosaic.version = 11 : i64} {
  func.func @_shift_stream_kernel(%arg0: i32, %arg1: i32, %arg2: i32, %arg3: memref<1x4x1xf32, #tpu.memory_space<vmem>>, %arg4: memref<1x4x16xf32, #tpu.memory_space<vmem>>, %arg5: memref<1x4x16xf32, #tpu.memory_space<vmem>>) attributes {dimension_semantics = [#tpu.dimension_semantics<parallel>, #tpu.dimension_semantics<parallel>, #tpu.dimension_semantics<parallel>], iteration_bounds = array<i64: 2, 1, 1>, scalar_prefetch = 0 : i64, scratch_operands = 0 : i64, tpu.core_type = #tpu.core_type<tc>, window_params = [{transform_indices = @transform_0, window_bounds = array<i64: 1, 4, 1>}, {transform_indices = @transform_1, window_bounds = array<i64: 1, 4, 16>}, {transform_indices = @transform_2, window_bounds = array<i64: 1, 4, 16>}]} {
    %c0 = arith.constant 0 : index
    %c0_0 = arith.constant 0 : index
    %c0_1 = arith.constant 0 : index
    %0 = vector.load %arg4[%c0, %c0_0, %c0_1] : memref<1x4x16xf32, #tpu.memory_space<vmem>>, vector<1x4x16xf32>
    %c0_2 = arith.constant 0 : index
    %c0_3 = arith.constant 0 : index
    %c0_4 = arith.constant 0 : index
    %1 = vector.load %arg3[%c0_2, %c0_3, %c0_4] : memref<1x4x1xf32, #tpu.memory_space<vmem>>, vector<1x4x1xf32>
    %2 = vector.broadcast %1 : vector<1x4x1xf32> to vector<1x4x16xf32>
    %3 = arith.addf %0, %2 : vector<1x4x16xf32>
    %c0_5 = arith.constant 0 : index
    %c0_6 = arith.constant 0 : index
    %c0_7 = arith.constant 0 : index
    %4 = vector.load %arg5[%c0_5, %c0_6, %c0_7] : memref<1x4x16xf32, #tpu.memory_space<vmem>>, vector<1x4x16xf32>
    tpu.vector_store %arg5[%c0_5, %c0_6, %c0_7], %3 {strides = array<i32>} : memref<1x4x16xf32, #tpu.memory_space<vmem>>, vector<1x4x16xf32>,
    return
  }
  func.func @transform_0(%arg0: i32, %arg1: i32, %arg2: i32) -> (i32, i32, i32) {
    %c0_i32 = arith.constant 0 : i32
    %c0_i32_0 = arith.constant 0 : i32
    return %arg0, %arg1, %c0_i32 : i32, i32, i32
  }
  func.func @transform_1(%arg0: i32, %arg1: i32, %arg2: i32) -> (i32, i32, i32) {
    %c0_i32 = arith.constant 0 : i32
    return %arg0, %arg1, %arg2 : i32, i32, i32
  }
  func.func @transform_2(%arg0: i32, %arg1: i32, %arg2: i32) -> (i32, i32, i32) {
    %c0_i32 = arith.constant 0 : i32
    return %arg0, %arg1, %arg2 : i32, i32, i32
  }
}

</mosaic_0001>

<llo_original>
// kernel: tpu_custom_call.1
$region0: #{tpu_custom_call.1}
  #allocation0 [shape = 'u32[]', space=smem, size = 0x4, offset = 0x4, fixed_abs, tag = 'smem constant byte address 0x4 - core index']
  #allocation1 [shape = 'u32[144,128]{1,0:T(1,128)}', space=vmem, size = 0x12000, scoped, tag = 'internal scratch']
  %s0 = inlined_call_operand.vmem [shape: f32[2,4,1], index: 0, kind: input, shape index: {}]
  %s1 = inlined_call_operand.vmem [shape: f32[2,4,16], index: 1, kind: input, shape index: {}]
  %s2 = inlined_call_operand.hbm [shape: f32[2,4,16], index: 2, kind: output, shape index: {}]
  %s3 = sld [smem:[#allocation0]]
  $region41: #{tpu_custom_call.1} parent=0
    _
  %s5 = ssub.s32 1, %s3
  %s6 = scalar_select 0, %s5, %s3
  $region1: #{tpu_custom_call.1} parent=0
    #allocation2 [shape = 'u8[4096]{0}', space=vmem, size = 0x1000, scoped, tag = 'output window, operand 0']
    #allocation3 [shape = 's32[2]{0}', space=sflag, size = 0x8, scoped, tag = 'scoped memory for tpu_custom_call.1']
    %7 = vsyncpa [#allocation3], 0
    %s8 = scalar_lea.sflag [#allocation3], 1
    %9 = vsyncpa %s8, 0
    loop: start=0, step=1, limit=4
    $region2: #{tpu_custom_call.1} parent=1 // loop_pre_header
      _
    $region3: #{tpu_custom_call.1} parent=1 // loop_header
      %s11 = sphi 0, %s15
      %p12 = scmp.ge.s32.totalorder %s11, 4
      %s18 = sphi 0, %s37
      %s19 = sphi 0, %s33
      %s20 = sphi 0, %s29
      %s21 = sphi 0, %s18
      %s22 = sphi 0, %s19
      %s23 = sphi 0, %s20
      %s24 = sphi 0, %s21
      %s25 = sphi 0, %s22
      %s26 = sphi 0, %s23
      %s42 = sphi 0, %s44
      %s45 = sphi 0, %s42
      %s46 = sphi 0, %s45
      %s62 = sphi 0, %s46
      %s72 = sphi 0, %s74
      %s75 = sphi 0, %s72
      %s76 = sphi 0, %s75
      %s92 = sphi 0, %s76
      %s102 = sphi 0, %s104
      %s105 = sphi 0, %s102
      %s106 = sphi 0, %s105
      %s122 = sphi 0, %s106
    $region4: #{tpu_custom_call.1} parent=1 // loop_header_branch
      %14 = sbr.rel (%p12) target = $region8
    $region5: #{tpu_custom_call.1} parent=1 // loop_body
      %s16 = ssub.s32 %s11, 1
      %s17 = ssub.s32 %s11, 2
      %s27 = sadd.s32 1, %s20
      %p28 = scmp.ge.s32.totalorder %s27, 1
      %s29 = scalar_select %p28, 0, %s27
      %s30 = sadd.s32 1, %s19
      %s31 = scalar_select %p28, %s30, %s19
      %p32 = scmp.ge.s32.totalorder %s31, 1
      %s33 = scalar_select %p32, 0, %s31
      %s34 = sadd.s32 1, %s18
      %s35 = scalar_select %p32, %s34, %s18
      %p36 = scmp.ge.s32.totalorder %s35, 2
      %s37 = scalar_select %p36, 0, %s35
      %s38 = ssub.s32 %s18, %s37
      %s39 = ssub.s32 %s19, %s33
      %s40 = sor.u32 %s38, %s39
      %p41 = scmp.eq.s32.totalorder %s40, 0
      %s43 = sadd.s32 %s42, 1
      %s44 = scalar_select %p41, %s42, %s43
      %p47 = pneg %p41
      %p48 = scmp.eq.s32.totalorder %s11, 1
      %p49 = por %p47, %p48
      %p50 = scmp.ne.s32.totalorder %s42, %s45
      %p51 = scmp.eq.s32.totalorder %s11, 0
      %p52 = por %p50, %p51
      %p53 = scmp.ne.s32.totalorder %s42, %s45
      %p54 = scmp.eq.s32.totalorder %s16, 1
      %p55 = por %p53, %p54
      %p56 = scmp.ne.s32.totalorder %s45, %s46
      %p57 = scmp.eq.s32.totalorder %s16, 0
      %p58 = por %p56, %p57
      %p59 = scmp.ne.s32.totalorder %s45, %s46
      %p60 = scmp.eq.s32.totalorder %s17, 1
      %p61 = por %p59, %p60
      %p63 = scmp.ne.s32.totalorder %s46, %s62
      %p64 = scmp.eq.s32.totalorder %s17, 0
      %p65 = por %p63, %p64
      %s66 = ssub.s32 %s18, %s37
      %s67 = ssub.s32 %s19, %s33
      %s68 = sor.u32 %s66, %s67
      %s69 = ssub.s32 %s20, %s29
      %s70 = sor.u32 %s68, %s69
      %p71 = scmp.eq.s32.totalorder %s70, 0
      %s73 = sadd.s32 %s72, 1
      %s74 = scalar_select %p71, %s72, %s73
      %p77 = pneg %p71
      %p78 = scmp.eq.s32.totalorder %s11, 1
      %p79 = por %p77, %p78
      %p80 = scmp.ne.s32.totalorder %s72, %s75
      %p81 = scmp.eq.s32.totalorder %s11, 0
      %p82 = por %p80, %p81
      %p83 = scmp.ne.s32.totalorder %s72, %s75
      %p84 = scmp.eq.s32.totalorder %s16, 1
      %p85 = por %p83, %p84
      %p86 = scmp.ne.s32.totalorder %s75, %s76
      %p87 = scmp.eq.s32.totalorder %s16, 0
      %p88 = por %p86, %p87
      %p89 = scmp.ne.s32.totalorder %s75, %s76
      %p90 = scmp.eq.s32.totalorder %s17, 1
      %p91 = por %p89, %p90
      %p93 = scmp.ne.s32.totalorder %s76, %s92
      %p94 = scmp.eq.s32.totalorder %s17, 0
      %p95 = por %p93, %p94
      %s96 = ssub.s32 %s18, %s37
      %s97 = ssub.s32 %s19, %s33
      %s98 = sor.u32 %s96, %s97
      %s99 = ssub.s32 %s20, %s29
      %s100 = sor.u32 %s98, %s99
      %p101 = scmp.eq.s32.totalorder %s100, 0
      %s103 = sadd.s32 %s102, 1
      %s104 = scalar_select %p101, %s102, %s103
      %p107 = pneg %p101
      %p108 = scmp.eq.s32.totalorder %s11, 1
      %p109 = por %p107, %p108
      %p110 = scmp.ne.s32.totalorder %s102, %s105
      %p111 = scmp.eq.s32.totalorder %s11, 0
      %p112 = por %p110, %p111
      %p113 = scmp.ne.s32.totalorder %s102, %s105
      %p114 = scmp.eq.s32.totalorder %s16, 1
      %p115 = por %p113, %p114
      %p116 = scmp.ne.s32.totalorder %s105, %s106
      %p117 = scmp.eq.s32.totalorder %s16, 0
      %p118 = por %p116, %p117
      %p119 = scmp.ne.s32.totalorder %s105, %s106
      %p120 = scmp.eq.s32.totalorder %s17, 1
      %p121 = por %p119, %p120
      %p123 = scmp.ne.s32.totalorder %s106, %s122
      %p124 = scmp.eq.s32.totalorder %s17, 0
      %p125 = por %p123, %p124
      %p126 = scmp.le.s32.totalorder 1, %s11
      %p127 = scmp.lt.s32.totalorder %s11, 3
      %p128 = pnand %p126, %p127
      %p129 = pneg %p128
      // Predicated region
      $region9: #{tpu_custom_call.1} parent=5 // pred_check
        _
      $region10: #{tpu_custom_call.1} parent=5 // pred_check_branch
        %131 = sbr.rel (%p128) target = $region12
      $region11: #{tpu_custom_call.1} parent=5 // pred_region
        %s132 = ssub.s32 %s11, 1
      $region12: #{tpu_custom_call.1} parent=5 // pred_fallthru
        _
      %p133 = scmp.lt.s32.totalorder %s11, 2
      // Predicated region
      $region13: #{tpu_custom_call.1} parent=5 // pred_check
        %p134 = pneg %p133
      $region14: #{tpu_custom_call.1} parent=5 // pred_check_branch
        %136 = sbr.rel (%p134) target = $region16
      $region15: #{tpu_custom_call.1} parent=5 // pred_region
        // Predicated region
        $region17: #{tpu_custom_call.1} parent=15 // pred_check
          %p137 = pneg %p52
        $region18: #{tpu_custom_call.1} parent=15 // pred_check_branch
          %139 = sbr.rel (%p137) target = $region20
        $region19: #{tpu_custom_call.1} parent=15 // pred_region
          %p140 = scmp.lt.s32.totalorder %s18, 1
          %s141 = scalar_select %p140, %s18, 1
          %p142 = scmp.lt.s32.totalorder %s19, 0
          %s143 = scalar_select %p142, %s19, 0
          %s144 = sadd.s32 %s143, %s141
          %s145 = smul.addr %s144, 4
          %s146 = scalar_lea.vmem %s0, %s145
        $region20: #{tpu_custom_call.1} parent=15 // pred_fallthru
          _
        // Predicated region
        $region21: #{tpu_custom_call.1} parent=15 // pred_check
          %p147 = pneg %p82
        $region22: #{tpu_custom_call.1} parent=15 // pred_check_branch
          %149 = sbr.rel (%p147) target = $region24
        $region23: #{tpu_custom_call.1} parent=15 // pred_region
          %p150 = scmp.lt.s32.totalorder %s18, 1
          %s151 = scalar_select %p150, %s18, 1
          %p152 = scmp.lt.s32.totalorder %s19, 0
          %s153 = scalar_select %p152, %s19, 0
          %p154 = scmp.lt.s32.totalorder %s20, 0
          %s155 = scalar_select %p154, %s20, 0
          %s156 = sadd.s32 %s155, %s153
          %s157 = sadd.s32 %s156, %s151
          %s158 = smul.addr %s157, 4
          %s159 = scalar_lea.vmem %s1, %s158
        $region24: #{tpu_custom_call.1} parent=15 // pred_fallthru
          _
      $region16: #{tpu_custom_call.1} parent=5 // pred_fallthru
        _
      %p160 = scmp.le.s32.totalorder 1, %s11
      %p161 = scmp.lt.s32.totalorder %s11, 3
      %p162 = pnand %p160, %p161
      %p163 = pneg %p162
      // Predicated region
      $region25: #{tpu_custom_call.1} parent=5 // pred_check
        _
      $region26: #{tpu_custom_call.1} parent=5 // pred_check_branch
        %165 = sbr.rel (%p162) target = $region28
      $region27: #{tpu_custom_call.1} parent=5 // pred_region
        %s166 = ssub.s32 %s11, 1
        %p167 = scmp.lt.s32.totalorder %s21, 1
        %s168 = scalar_select %p167, %s21, 1
        %p169 = scmp.lt.s32.totalorder %s22, 0
        %s170 = scalar_select %p169, %s22, 0
        %s171 = sadd.s32 %s170, %s168
        %s172 = smul.addr %s171, 4
        %s173 = scalar_lea.vmem %s0, %s172
        %p174 = pneg %p58
        %p175 = pneg %p55
        %p176 = scmp.lt.s32.totalorder %s21, 1
        %s177 = scalar_select %p176, %s21, 1
        %p178 = scmp.lt.s32.totalorder %s22, 0
        %s179 = scalar_select %p178, %s22, 0
        %p180 = scmp.lt.s32.totalorder %s23, 0
        %s181 = scalar_select %p180, %s23, 0
        %s182 = sadd.s32 %s181, %s179
        %s183 = sadd.s32 %s182, %s177
        %s184 = smul.addr %s183, 4
        %s185 = scalar_lea.vmem %s1, %s184
        %p186 = pneg %p88
        %p187 = pneg %p85
        %p188 = pneg %p118
        %p189 = pneg %p115
        %s190 = sand.u32 %s105, 1
        %s191 = scalar_lea.sflag [#allocation3], %s190
        %s192 = sand.u32 %s105, 1
        %s193 = smul.addr %s192, 4
        %s194 = scalar_lea.vmem [#allocation2], %s193
        %p195 = scmp.lt.s32.totalorder %s21, 1
        %s196 = scalar_select %p195, %s21, 1
        %p197 = scmp.lt.s32.totalorder %s22, 0
        %s198 = scalar_select %p197, %s22, 0
        %s199 = sadd.s32 %s198, %s196
        %s200 = smul.addr %s199, 4
        %s201 = scalar_lea.vmem %s0, %s200
        %p202 = scmp.lt.s32.totalorder %s21, 1
        %s203 = scalar_select %p202, %s21, 1
        %p204 = scmp.lt.s32.totalorder %s22, 0
        %s205 = scalar_select %p204, %s22, 0
        %p206 = scmp.lt.s32.totalorder %s23, 0
        %s207 = scalar_select %p206, %s23, 0
        %s208 = sadd.s32 %s207, %s205
        %s209 = sadd.s32 %s208, %s203
        %s210 = smul.addr %s209, 4
        %s211 = scalar_lea.vmem %s1, %s210
        %v212 = vld [vmem:[%s211] sm:$0xf]
        %v213 = vld [vmem:[%s201] sm:$0xf]
        %215 = vset.pattern.permute.xlu0 0
        %216 = vperm.xlu0 %215, %v213
        %v217 = vpop.permute.xlu0 %216
        %v219 = vadd.f32 %v212, %v217
        %vm220 = vcmask 125952
        %221 = vst.msk [vmem:[%s194] sm:$0xf] %vm220, %v219
        %s222 = sand.u32 %s105, 1
        %s223 = scalar_lea.sflag [#allocation3], %s222
        %s224 = sand.u32 %s105, 1
        %s225 = smul.addr %s224, 4
        %s226 = scalar_lea.vmem [#allocation2], %s225
        // Predicated region
        $region29: #{tpu_custom_call.1} parent=27 // pred_check
          %p227 = pneg %p115
        $region30: #{tpu_custom_call.1} parent=27 // pred_check_branch
          %229 = sbr.rel (%p227) target = $region32
        $region31: #{tpu_custom_call.1} parent=27 // pred_region
          %s231 = ssub.s32 64, 64
          %232 = vsyncadd %s223, %s231
          %s233 = sadd.s32 %s23, %s22
          %s234 = sadd.s32 %s233, %s21
          %s235 = smul.addr %s234, 64
          %s236 = scalar_lea.hbm %s2, %s235
          %s238 = sshll.u32 %s226, 4
          %s239 = int_to_ptr.vmem [resolvable:$true] %s238
          %241 = dma.vmem_to_hbm [thread:$0]  %s239, 64, %s236, %s223
        $region32: #{tpu_custom_call.1} parent=27 // pred_fallthru
          _
      $region28: #{tpu_custom_call.1} parent=5 // pred_fallthru
        _
      %p242 = scmp.le.s32.totalorder 2, %s11
      // Predicated region
      $region33: #{tpu_custom_call.1} parent=5 // pred_check
        %p243 = pneg %p242
      $region34: #{tpu_custom_call.1} parent=5 // pred_check_branch
        %245 = sbr.rel (%p243) target = $region36
      $region35: #{tpu_custom_call.1} parent=5 // pred_region
        %s246 = ssub.s32 %s11, 2
        // Predicated region
        $region37: #{tpu_custom_call.1} parent=35 // pred_check
          %p247 = pneg %p121
        $region38: #{tpu_custom_call.1} parent=35 // pred_check_branch
          %249 = sbr.rel (%p247) target = $region40
        $region39: #{tpu_custom_call.1} parent=35 // pred_region
          %s250 = sand.u32 %s106, 1
          %s251 = scalar_lea.sflag [#allocation3], %s250
          %s252 = sand.u32 %s106, 1
          %s253 = smul.addr %s252, 4
          %s254 = scalar_lea.vmem [#allocation2], %s253
          %255 = dma.done %s251, 64
        $region40: #{tpu_custom_call.1} parent=35 // pred_fallthru
          _
      $region36: #{tpu_custom_call.1} parent=5 // pred_fallthru
        _
    $region6: #{tpu_custom_call.1} parent=1 // loop_footer
      %s15 = sadd.s32 1, %s11
    $region7: #{tpu_custom_call.1} parent=1 // loop_footer_branch
      %10 = sbr.rel target = $region3
    $region8: #{tpu_custom_call.1} parent=1 // loop_exit
      _
    %256 = vsyncpa [#allocation3], 1
    %s257 = scalar_lea.sflag [#allocation3], 1
    %258 = vsyncpa %s257, 1

</llo_original>
